<compile_context>
chip_gen: v7x
topology: tpu7x:2x2x1
jax: 0.10.0
libtpu: 0.0.40
codegen_flags: <defaults>
</compile_context>

<pallas_src>
import functools

import jax
import jax.numpy as jnp
from jax.experimental import pallas as pl
from jax.experimental.pallas import tpu as pltpu


def _round_up(x, m):
    return (x + m - 1) // m * m


def _cdiv(a, b):
    return -(-a // b)


def _mlp_kernel(n_layers, x_ref, w0_ref, w_ref, b_ref, out_ref):
    """Fused MLP forward on one batch tile.

    x_ref  : (TM, in_features)   bf16 activation tile (native width)
    w0_ref : (in_features, F)    bf16 first-layer weight (VMEM-resident)
    w_ref  : (max(L-1,1), F, F)  bf16 stacked weights for layers 1..L-1
    b_ref  : (L, 1, F)           f32  stacked zero-padded biases
    out_ref: (TM, out_features)  f32
    h = tanh(h @ W_l + b_l) for l < L-1; last layer has no tanh.
    """
    # Layer 0: bf16 MXU matmul, f32 accumulate, f32 bias add.
    h = jnp.dot(x_ref[...], w0_ref[...],
                preferred_element_type=jnp.float32) + b_ref[0]
    for l in range(1, n_layers):                      # static unroll
        h = jnp.tanh(h).astype(jnp.bfloat16)          # f32 tanh (v5e-safe), 1 cast
        h = jnp.dot(h, w_ref[l - 1],
                    preferred_element_type=jnp.float32) + b_ref[l]
    # Lane-slice to the real output width (tiny masked store: 32 B/row).
    out_ref[...] = h[:, : out_ref.shape[-1]].astype(out_ref.dtype)


def pack_params(params):
    """Pack (W, b) list once: zero-pad feature dims to F=128k, cast W to bf16.

    Hoisted out of the per-forward path so the scatter/cast ops do not
    serialize in front of every kernel launch.
    """
    n_layers = len(params)
    in_features = params[0][0].shape[0]
    out_features = params[-1][0].shape[1]
    F = _round_up(max(w.shape[1] for w, _ in params), 128)

    w0 = jnp.zeros((in_features, F), jnp.bfloat16)
    w0 = w0.at[:, : params[0][0].shape[1]].set(params[0][0].astype(jnp.bfloat16))

    n_rest = max(n_layers - 1, 1)
    w_stack = jnp.zeros((n_rest, F, F), jnp.bfloat16)
    for l in range(1, n_layers):
        w, _ = params[l]
        w_stack = w_stack.at[l - 1, : w.shape[0], : w.shape[1]].set(
            w.astype(jnp.bfloat16))

    b_stack = jnp.zeros((n_layers, 1, F), jnp.float32)
    for l, (_, b) in enumerate(params):
        b_stack = b_stack.at[l, :, : b.shape[1]].set(b.astype(jnp.float32))

    return dict(w0=w0, w_stack=w_stack, b_stack=b_stack,
                n_layers=n_layers, in_features=in_features,
                out_features=out_features, F=F)


def net_xavier_forward(x, packed, *, tm_cap=1024):
    """x: (batch, in_features) f32/bf16; packed: output of pack_params."""
    n_layers = packed["n_layers"]
    in_features = packed["in_features"]
    out_features = packed["out_features"]
    F = packed["F"]
    w0, w_stack, b_stack = packed["w0"], packed["w_stack"], packed["b_stack"]

    batch = x.shape[0]
    assert x.shape[1] == in_features

    # --- batch tile selection -------------------------------------------
    # Rows are 16-aligned (bf16 sublane packing).  Pick the smallest number
    # of tiles under the cap that minimizes padding; keep >= 2 grid steps
    # when the batch allows it so v7x's 2 TensorCores can split the batch
    # (v5e/v6e have one TC, where fewer bigger tiles is strictly better).
    b_al = _round_up(batch, 16)
    n_tiles = max(1, _cdiv(b_al, tm_cap))
    if n_tiles == 1 and b_al >= 32:
        n_tiles = 2
    tm = _round_up(_cdiv(b_al, n_tiles), 16)
    b_pad = n_tiles * tm

    # --- activations: bf16, native feature width, pad batch only ---------
    x_bf = x.astype(jnp.bfloat16)
    if b_pad != batch:
        x_bf = jnp.pad(x_bf, ((0, b_pad - batch), (0, 0)))

    kernel = functools.partial(_mlp_kernel, n_layers)

    flops = 2 * b_pad * (in_features * F + max(n_layers - 1, 0) * F * F)
    transcendentals = b_pad * F * max(n_layers - 1, 0)
    bytes_accessed = (x_bf.size * 2 + b_pad * out_features * 4
                      + w0.size * 2 + w_stack.size * 2 + b_stack.size * 4)

    out = pl.pallas_call(
        kernel,
        out_shape=jax.ShapeDtypeStruct((b_pad, out_features), jnp.float32),
        grid_spec=pltpu.PrefetchScalarGridSpec(
            num_scalar_prefetch=0,
            grid=(n_tiles,),
            in_specs=[
                # activations: tiled over batch, double-buffered by Pallas
                pl.BlockSpec((tm, in_features), lambda i: (i, 0)),
                # parameters: constant blocks -> VMEM-resident, no re-DMA
                pl.BlockSpec((in_features, F), lambda i: (0, 0)),
                pl.BlockSpec((w_stack.shape[0], F, F), lambda i: (0, 0, 0)),
                pl.BlockSpec((n_layers, 1, F), lambda i: (0, 0, 0)),
            ],
            out_specs=pl.BlockSpec((tm, out_features), lambda i: (i, 0)),
        ),
        compiler_params=pltpu.CompilerParams(
            dimension_semantics=("parallel",)),   # v7x: 2 TCs share the batch
        cost_estimate=pl.CostEstimate(
            flops=flops,
            transcendentals=transcendentals,
            bytes_accessed=bytes_accessed),
    )(x_bf, w0, w_stack, b_stack)

    return out[:batch]


def init_params(key, layers):
    """Xavier-uniform weights (torch.nn.init.xavier_uniform_) and PyTorch
    default uniform(-1/sqrt(fan_in), 1/sqrt(fan_in)) biases."""
    params = []
    for in_size, out_size in zip(layers, layers[1:]):
        key, wk, bk = jax.random.split(key, 3)
        bound_w = (6.0 / (in_size + out_size)) ** 0.5
        w = jax.random.uniform(wk, (in_size, out_size), jnp.float32,
                               minval=-bound_w, maxval=bound_w)
        bound_b = 1.0 / (in_size ** 0.5)
        b = jax.random.uniform(bk, (1, out_size), jnp.float32,
                               minval=-bound_b, maxval=bound_b)
        params.append((w, b))
    return params


def reference_forward_f32(x, params):
    h = x
    n_layers = len(params)
    for l, (w, b) in enumerate(params):
        h = h @ w + b
        if l < n_layers - 1:
            h = jnp.tanh(h)
    return h


def reference_forward_bf16(x, params):
    """Quantization-matched reference (bf16 operands, f32 accumulation)."""
    h = x.astype(jnp.bfloat16)
    n_layers = len(params)
    for l, (w, b) in enumerate(params):
        h = jnp.dot(h, w.astype(jnp.bfloat16),
                    preferred_element_type=jnp.float32) + b
        if l < n_layers - 1:
            h = jnp.tanh(h).astype(jnp.bfloat16)
    return h


if __name__ == "__main__":
    key = jax.random.PRNGKey(0)
    Layers = [16, 32, 32, 8]   # input 16 -> hidden 32 -> hidden 32 -> output 8
    params_key, xk1, xk2 = jax.random.split(key, 3)
    params = init_params(params_key, Layers)
    packed = pack_params(params)   # packed once, reused across forwards

    # Small batch (single grid step).
    batch = 8
    x = jax.random.normal(xk1, (batch, Layers[0]), jnp.float32)
    yhat = jax.block_until_ready(net_xavier_forward(x, packed))
    assert yhat.shape == (batch, Layers[-1])
    y_bf = reference_forward_bf16(x, params)
    y_f32 = reference_forward_f32(x, params)
    assert jnp.allclose(yhat, y_bf, atol=5e-3, rtol=5e-3), \
        float(jnp.max(jnp.abs(yhat - y_bf)))
    assert jnp.allclose(yhat, y_f32, atol=5e-2, rtol=5e-2), \
        float(jnp.max(jnp.abs(yhat - y_f32)))

    # Larger batch: exercises the multi-tile grid + batch-padding path.
    batch2 = 300
    x2 = jax.random.normal(xk2, (batch2, Layers[0]), jnp.float32)
    yhat2 = jax.block_until_ready(net_xavier_forward(x2, packed))
    assert yhat2.shape == (batch2, Layers[-1])
    y2_bf = reference_forward_bf16(x2, params)
    y2_f32 = reference_forward_f32(x2, params)
    assert jnp.allclose(yhat2, y2_bf, atol=5e-3, rtol=5e-3), \
        float(jnp.max(jnp.abs(yhat2 - y2_bf)))
    assert jnp.allclose(yhat2, y2_f32, atol=5e-2, rtol=5e-2), \
        float(jnp.max(jnp.abs(yhat2 - y2_f32)))

    print("KERNEL_OK")
</pallas_src>

<mosaic_0001>
module attributes {stable_mosaic.version = 11 : i64} {
  func.func @_mlp_kernel(%arg0: i32, %arg1: memref<16x16xbf16, #tpu.memory_space<vmem>>, %arg2: memref<16x128xbf16, #tpu.memory_space<vmem>>, %arg3: memref<2x128x128xbf16, #tpu.memory_space<vmem>>, %arg4: memref<3x1x128xf32, #tpu.memory_space<vmem>>, %arg5: memref<16x8xf32, #tpu.memory_space<vmem>>) attributes {dimension_semantics = [#tpu.dimension_semantics<parallel>], iteration_bounds = array<i64: 1>, scalar_prefetch = 0 : i64, scratch_operands = 0 : i64, tpu.core_type = #tpu.core_type<tc>, window_params = [{transform_indices = @transform_0, window_bounds = array<i64: 16, 16>}, {pipeline_mode = #tpu.pipeline_mode<synchronous>, transform_indices = @transform_1, window_bounds = array<i64: 16, 128>}, {pipeline_mode = #tpu.pipeline_mode<synchronous>, transform_indices = @transform_2, window_bounds = array<i64: 2, 128, 128>}, {pipeline_mode = #tpu.pipeline_mode<synchronous>, transform_indices = @transform_3, window_bounds = array<i64: 3, 1, 128>}, {transform_indices = @transform_4, window_bounds = array<i64: 16, 8>}]} {
    %c0 = arith.constant 0 : index
    %c0_0 = arith.constant 0 : index
    %0 = vector.load %arg1[%c0, %c0_0] : memref<16x16xbf16, #tpu.memory_space<vmem>>, vector<16x16xbf16>
    %c0_1 = arith.constant 0 : index
    %c0_2 = arith.constant 0 : index
    %1 = vector.load %arg2[%c0_1, %c0_2] : memref<16x128xbf16, #tpu.memory_space<vmem>>, vector<16x128xbf16>
    %cst = arith.constant dense<0.000000e+00> : vector<16x128xf32>
    %2 = tpu.matmul %0, %1, %cst {dimension_numbers = #tpu.dot_dimension_numbers<[1], [0], [0], [1], [0, 0, 1, 1], [], []>} : vector<16x16xbf16>, vector<16x128xbf16>, vector<16x128xf32> -> vector<16x128xf32>
    %c0_3 = arith.constant 0 : index
    %c0_4 = arith.constant 0 : index
    %c0_5 = arith.constant 0 : index
    %3 = vector.load %arg4[%c0_3, %c0_4, %c0_5] : memref<3x1x128xf32, #tpu.memory_space<vmem>>, vector<1x1x128xf32>
    %4 = vector.shape_cast %3 : vector<1x1x128xf32> to vector<1x128xf32>
    %5 = vector.broadcast %4 : vector<1x128xf32> to vector<16x128xf32>
    %6 = arith.addf %2, %5 : vector<16x128xf32>
    %7 = math.tanh %6 : vector<16x128xf32>
    %8 = arith.truncf %7 : vector<16x128xf32> to vector<16x128xbf16>
    %c0_6 = arith.constant 0 : index
    %c0_7 = arith.constant 0 : index
    %c0_8 = arith.constant 0 : index
    %9 = vector.load %arg3[%c0_6, %c0_7, %c0_8] : memref<2x128x128xbf16, #tpu.memory_space<vmem>>, vector<1x128x128xbf16>
    %10 = vector.shape_cast %9 : vector<1x128x128xbf16> to vector<128x128xbf16>
    %cst_9 = arith.constant dense<0.000000e+00> : vector<16x128xf32>
    %11 = tpu.matmul %8, %10, %cst_9 {dimension_numbers = #tpu.dot_dimension_numbers<[1], [0], [0], [1], [0, 0, 1, 1], [], []>} : vector<16x128xbf16>, vector<128x128xbf16>, vector<16x128xf32> -> vector<16x128xf32>
    %c1 = arith.constant 1 : index
    %c0_10 = arith.constant 0 : index
    %c0_11 = arith.constant 0 : index
    %12 = vector.load %arg4[%c1, %c0_10, %c0_11] : memref<3x1x128xf32, #tpu.memory_space<vmem>>, vector<1x1x128xf32>
    %13 = vector.shape_cast %12 : vector<1x1x128xf32> to vector<1x128xf32>
    %14 = vector.broadcast %13 : vector<1x128xf32> to vector<16x128xf32>
    %15 = arith.addf %11, %14 : vector<16x128xf32>
    %16 = math.tanh %15 : vector<16x128xf32>
    %17 = arith.truncf %16 : vector<16x128xf32> to vector<16x128xbf16>
    %c1_12 = arith.constant 1 : index
    %c0_13 = arith.constant 0 : index
    %c0_14 = arith.constant 0 : index
    %18 = vector.load %arg3[%c1_12, %c0_13, %c0_14] : memref<2x128x128xbf16, #tpu.memory_space<vmem>>, vector<1x128x128xbf16>
    %19 = vector.shape_cast %18 : vector<1x128x128xbf16> to vector<128x128xbf16>
    %cst_15 = arith.constant dense<0.000000e+00> : vector<16x128xf32>
    %20 = tpu.matmul %17, %19, %cst_15 {dimension_numbers = #tpu.dot_dimension_numbers<[1], [0], [0], [1], [0, 0, 1, 1], [], []>} : vector<16x128xbf16>, vector<128x128xbf16>, vector<16x128xf32> -> vector<16x128xf32>
    %c2 = arith.constant 2 : index
    %c0_16 = arith.constant 0 : index
    %c0_17 = arith.constant 0 : index
    %21 = vector.load %arg4[%c2, %c0_16, %c0_17] : memref<3x1x128xf32, #tpu.memory_space<vmem>>, vector<1x1x128xf32>
    %22 = vector.shape_cast %21 : vector<1x1x128xf32> to vector<1x128xf32>
    %23 = vector.broadcast %22 : vector<1x128xf32> to vector<16x128xf32>
    %24 = arith.addf %20, %23 : vector<16x128xf32>
    %25 = vector.extract_strided_slice %24 {offsets = [0, 0], sizes = [16, 8], strides = [1, 1]} : vector<16x128xf32> to vector<16x8xf32>
    %c0_18 = arith.constant 0 : index
    %c0_19 = arith.constant 0 : index
    %26 = vector.load %arg5[%c0_18, %c0_19] : memref<16x8xf32, #tpu.memory_space<vmem>>, vector<16x8xf32>
    tpu.vector_store %arg5[%c0_18, %c0_19], %25 {strides = array<i32>} : memref<16x8xf32, #tpu.memory_space<vmem>>, vector<16x8xf32>,
    return
  }
  func.func @transform_0(%arg0: i32) -> (i32, i32) {
    %c0_i32 = arith.constant 0 : i32
    %c0_i32_0 = arith.constant 0 : i32
    return %arg0, %c0_i32 : i32, i32
  }
  func.func @transform_1(%arg0: i32) -> (i32, i32) {
    %c0_i32 = arith.constant 0 : i32
    %c0_i32_0 = arith.constant 0 : i32
    %c0_i32_1 = arith.constant 0 : i32
    return %c0_i32, %c0_i32_0 : i32, i32
  }
  func.func @transform_2(%arg0: i32) -> (i32, i32, i32) {
    %c0_i32 = arith.constant 0 : i32
    %c0_i32_0 = arith.constant 0 : i32
    %c0_i32_1 = arith.constant 0 : i32
    %c0_i32_2 = arith.constant 0 : i32
    return %c0_i32, %c0_i32_0, %c0_i32_1 : i32, i32, i32
  }
  func.func @transform_3(%arg0: i32) -> (i32, i32, i32) {
    %c0_i32 = arith.constant 0 : i32
    %c0_i32_0 = arith.constant 0 : i32
    %c0_i32_1 = arith.constant 0 : i32
    %c0_i32_2 = arith.constant 0 : i32
    return %c0_i32, %c0_i32_0, %c0_i32_1 : i32, i32, i32
  }
  func.func @transform_4(%arg0: i32) -> (i32, i32) {
    %c0_i32 = arith.constant 0 : i32
    %c0_i32_0 = arith.constant 0 : i32
    return %arg0, %c0_i32 : i32, i32
  }
}

</mosaic_0001>

<llo_original>
// kernel: tpu_custom_call.1
$region0: #{tpu_custom_call.1}
  #allocation0 [shape = 'u32[]', space=smem, size = 0x4, offset = 0x4, fixed_abs, tag = 'smem constant byte address 0x4 - core index']
  #allocation1 [shape = 'u32[144,128]{1,0:T(1,128)}', space=vmem, size = 0x12000, scoped, tag = 'internal scratch']
  %s0 = inlined_call_operand.hbm [shape: bf16[16,16], index: 0, kind: input, shape index: {}]
  %s1 = inlined_call_operand.hbm [shape: bf16[16,128], index: 1, kind: input, shape index: {}]
  %s2 = inlined_call_operand.hbm [shape: bf16[2,128,128], index: 2, kind: input, shape index: {}]
  %s3 = inlined_call_operand.vmem [shape: f32[3,1,128], index: 3, kind: input, shape index: {}]
  %s4 = inlined_call_operand.vmem [shape: f32[16,8], index: 4, kind: output, shape index: {}]
  %s5 = sld [smem:[#allocation0]]
  $region38: #{tpu_custom_call.1} parent=0
    _
  %s7 = ssub.s32 1, %s5
  %s8 = scalar_select 0, %s7, %s5
  $region1: #{tpu_custom_call.1} parent=0
    #allocation2 [shape = 'u8[4096]{0}', space=vmem, size = 0x1000, scoped, tag = 'input window, operand 0, single buffered']
    #allocation3 [shape = 's32[1]{0}', space=sflag, size = 0x4, scoped, tag = 'scoped memory for tpu_custom_call.1']
    #allocation4 [shape = 'u8[4096]{0}', space=vmem, size = 0x1000, scoped, tag = 'input window, operand 1, single buffered']
    #allocation5 [shape = 's32[1]{0}', space=sflag, size = 0x4, scoped, tag = 'scoped memory for tpu_custom_call.1']
    #allocation6 [shape = 'u8[65536]{0}', space=vmem, size = 0x10000, scoped, tag = 'input window, operand 2, single buffered']
    %9 = vsyncpa [#allocation3], 0
    %10 = vsyncpa [#allocation5], 0
    // Predicated region
    $region2: #{tpu_custom_call.1} parent=1 // pred_check
      _
    $region3: #{tpu_custom_call.1} parent=1 // pred_check_branch
      %12 = sbr.rel (0) target = $region5
    $region4: #{tpu_custom_call.1} parent=1 // pred_region
      %s14 = ssub.s32 128, 128
      %15 = vsyncadd [#allocation3], %s14
      %s16 = sshll.u32 [#allocation2], 4
      %s17 = int_to_ptr.vmem [resolvable:$true] %s16
      %22 = dma.hbm_to_vmem [thread:$0]  %s0, 128, %s17, [#allocation3], 64, 64, 4
    $region5: #{tpu_custom_call.1} parent=1 // pred_fallthru
      _
    // Predicated region
    $region6: #{tpu_custom_call.1} parent=1 // pred_check
      _
    $region7: #{tpu_custom_call.1} parent=1 // pred_check_branch
      %24 = sbr.rel (0) target = $region9
    $region8: #{tpu_custom_call.1} parent=1 // pred_region
      %s26 = ssub.s32 128, 128
      %27 = vsyncadd [#allocation5], %s26
      %s28 = sshll.u32 [#allocation4], 4
      %s29 = int_to_ptr.vmem [resolvable:$true] %s28
      %34 = dma.hbm_to_vmem [thread:$0]  %s1, 128, %s29, [#allocation5], 64, 64, 4
    $region9: #{tpu_custom_call.1} parent=1 // pred_fallthru
      _
    // Predicated region
    $region10: #{tpu_custom_call.1} parent=1 // pred_check
      _
    $region11: #{tpu_custom_call.1} parent=1 // pred_check_branch
      %36 = sbr.rel (0) target = $region13
    $region12: #{tpu_custom_call.1} parent=1 // pred_region
      %s38 = ssub.s32 2048, 2048
      %39 = vsyncadd [#allocation5], %s38
      %s40 = sshll.u32 [#allocation6], 4
      %s41 = int_to_ptr.vmem [resolvable:$true] %s40
      %46 = dma.hbm_to_vmem [thread:$0]  %s2, 2048, %s41, [#allocation5], 64, 64, 4
    $region13: #{tpu_custom_call.1} parent=1 // pred_fallthru
      _
    // Predicated region
    $region14: #{tpu_custom_call.1} parent=1 // pred_check
      _
    $region15: #{tpu_custom_call.1} parent=1 // pred_check_branch
      %48 = sbr.rel (0) target = $region17
    $region16: #{tpu_custom_call.1} parent=1 // pred_region
      _
    $region17: #{tpu_custom_call.1} parent=1 // pred_fallthru
      _
    // Predicated region
    $region18: #{tpu_custom_call.1} parent=1 // pred_check
      _
    $region19: #{tpu_custom_call.1} parent=1 // pred_check_branch
      %50 = sbr.rel (0) target = $region21
    $region20: #{tpu_custom_call.1} parent=1 // pred_region
      %51 = dma.done [#allocation3], 128
    $region21: #{tpu_custom_call.1} parent=1 // pred_fallthru
      _
    // Predicated region
    $region22: #{tpu_custom_call.1} parent=1 // pred_check
      _
    $region23: #{tpu_custom_call.1} parent=1 // pred_check_branch
      %53 = sbr.rel (0) target = $region25
    $region24: #{tpu_custom_call.1} parent=1 // pred_region
      %54 = dma.done [#allocation5], 128
    $region25: #{tpu_custom_call.1} parent=1 // pred_fallthru
      _
    // Predicated region
    $region26: #{tpu_custom_call.1} parent=1 // pred_check
      _
    $region27: #{tpu_custom_call.1} parent=1 // pred_check_branch
      %56 = sbr.rel (0) target = $region29
    $region28: #{tpu_custom_call.1} parent=1 // pred_region
      %57 = dma.done [#allocation5], 2048
    $region29: #{tpu_custom_call.1} parent=1 // pred_fallthru
      _
    %v59 = vld [vmem:[#allocation2] sm:$0xf]
    %v60 = vld [vmem:[#allocation2 + $0x4] sm:$0xf]
    %v61 = vld [vmem:[#allocation4] sm:$0xf]
    %v62 = vld [vmem:[#allocation4 + $0x4] sm:$0xf]
    %v63 = vld [vmem:[%s3] sm:$0x1]
    %v65 = vlaneseq
    %v66 = vshrl.u32 %v65, 7
    %v67 = vsub.s32 0, %v66
    %v68 = vrot.slane %v63, %v67
    %v72 = vunpack.c.l.b16 %v59
    %v73 = vunpack.c.l.b16 %v60
    %v74 = vpack.c.b16 %v73, %v72
    %v77 = vunpack.c.l.b16 %v61
    %v78 = vunpack.c.l.b16 %v62
    %v79 = vpack.c.b16 %v78, %v77
    %vm81 = vcmask 130048
    %v83 = vsel %vm81, %v74, 0
    %85 = vmatprep.subr.bf16.mxu0 0
    %86 = vmatpush1.bf16.msra.mxu0 %v79
    %87 = vmatprep.subr.bf16.mxu0 0
    %88 = vmatpush1.bf16.msra.mxu0 0
    %89 = vmatprep.subr.bf16.mxu0 0
    %90 = vmatpush1.bf16.msra.mxu0 0
    %91 = vmatprep.subr.bf16.mxu0 0
    %92 = vmatpush1.bf16.msra.mxu0 0
    %93 = vmatprep.subr.bf16.mxu0 0
    %94 = vmatpush1.bf16.msra.mxu0 0
    %95 = vmatprep.subr.bf16.mxu0 0
    %96 = vmatpush1.bf16.msra.mxu0 0
    %97 = vmatprep.subr.bf16.mxu0 0
    %98 = vmatpush1.bf16.msra.mxu0 0
    %99 = vmatprep.subr.bf16.mxu0 0
    %100 = vmatpush1.bf16.msra.mxu0 0
    %101 = vmatprep.subr.bf16.mxu0 0
    %102 = vmatpush1.bf16.msra.mxu0 0
    %103 = vmatprep.subr.bf16.mxu0 0
    %104 = vmatpush1.bf16.msra.mxu0 0
    %105 = vmatprep.subr.bf16.mxu0 0
    %106 = vmatpush1.bf16.msra.mxu0 0
    %107 = vmatprep.subr.bf16.mxu0 0
    %108 = vmatpush1.bf16.msra.mxu0 0
    %109 = vmatprep.subr.bf16.mxu0 0
    %110 = vmatpush1.bf16.msra.mxu0 0
    %111 = vmatprep.subr.bf16.mxu0 0
    %112 = vmatpush1.bf16.msra.mxu0 0
    %113 = vmatprep.subr.bf16.mxu0 0
    %114 = vmatpush1.bf16.msra.mxu0 0
    %115 = vmatprep.subr.bf16.mxu0 0
    %116 = vmatpush1.bf16.msra.mxu0 0
    %117 = vmatprep.mubr.bf16.mxu0 0
    %118 = vmatmul.mubr.bf16.gmra.mrb[0].mxu0 %v83
    %v119 = vpop.f32.mrb[0].mxu0
    %v120 = vadd.f32 %v68, %v119
    %v121 = vpop.f32.mrb[0].mxu0
    %v122 = vpop.f32.mrb[0].mxu0
    %v123 = vadd.f32 %v68, %v122
    %v124 = vpop.f32.mrb[0].mxu0
    %125 = vdwg.mxu0
    %v126 = vtanh.pop %v120
    %v127 = vtanh.pop %v123
    %v128 = vpack.c.bf16 %v127, %v126
    %v129 = vld [vmem:[#allocation6] sm:$0xf]
    %v130 = vld [vmem:[#allocation6 + $0x4] sm:$0xf]
    %v131 = vld [vmem:[#allocation6 + $0x8] sm:$0xf]
    %v132 = vld [vmem:[#allocation6 + $0xc] sm:$0xf]
    %v133 = vld [vmem:[#allocation6 + $0x10] sm:$0xf]
    %v134 = vld [vmem:[#allocation6 + $0x14] sm:$0xf]
    %v135 = vld [vmem:[#allocation6 + $0x18] sm:$0xf]
    %v136 = vld [vmem:[#allocation6 + $0x1c] sm:$0xf]
    %v137 = vld [vmem:[#allocation6 + $0x20] sm:$0xf]
    %v138 = vld [vmem:[#allocation6 + $0x24] sm:$0xf]
    %v139 = vld [vmem:[#allocation6 + $0x28] sm:$0xf]
    %v140 = vld [vmem:[#allocation6 + $0x2c] sm:$0xf]
    %v141 = vld [vmem:[#allocation6 + $0x30] sm:$0xf]
    %v142 = vld [vmem:[#allocation6 + $0x34] sm:$0xf]
    %v143 = vld [vmem:[#allocation6 + $0x38] sm:$0xf]
    %v144 = vld [vmem:[#allocation6 + $0x3c] sm:$0xf]
    %s145 = scalar_lea.vmem %s3, 1
    %v146 = vld [vmem:[%s145] sm:$0x1]
    %v148 = vlaneseq
    %v149 = vshrl.u32 %v148, 7
    %v150 = vsub.s32 0, %v149
    %v151 = vrot.slane %v146, %v150
    %v169 = vunpack.c.l.b16 %v129
    %v170 = vunpack.c.l.b16 %v130
    %v171 = vunpack.c.l.b16 %v131
    %v172 = vunpack.c.l.b16 %v132
    %v173 = vunpack.c.l.b16 %v133
    %v174 = vunpack.c.l.b16 %v134
    %v175 = vunpack.c.l.b16 %v135
    %v176 = vunpack.c.l.b16 %v136
    %v177 = vunpack.c.l.b16 %v137
    %v178 = vunpack.c.l.b16 %v138
    %v179 = vunpack.c.l.b16 %v139
    %v180 = vunpack.c.l.b16 %v140
    %v181 = vunpack.c.l.b16 %v141
    %v182 = vunpack.c.l.b16 %v142
    %v183 = vunpack.c.l.b16 %v143
    %v184 = vunpack.c.l.b16 %v144
    %v185 = vpack.c.b16 %v170, %v169
    %v186 = vpack.c.b16 %v172, %v171
    %v187 = vpack.c.b16 %v174, %v173
    %v188 = vpack.c.b16 %v176, %v175
    %v189 = vpack.c.b16 %v178, %v177
    %v190 = vpack.c.b16 %v180, %v179
    %v191 = vpack.c.b16 %v182, %v181
    %v192 = vpack.c.b16 %v184, %v183
    %201 = vmatprep.subr.bf16.mxu0 0
    %202 = vmatpush1.bf16.msra.mxu0 %v185
    %203 = vmatprep.subr.bf16.mxu0 0
    %204 = vmatpush1.bf16.msra.mxu0 %v186
    %205 = vmatprep.subr.bf16.mxu0 0
    %206 = vmatpush1.bf16.msra.mxu0 %v187
    %207 = vmatprep.subr.bf16.mxu0 0
    %208 = vmatpush1.bf16.msra.mxu0 %v188
    %209 = vmatprep.subr.bf16.mxu0 0
    %210 = vmatpush1.bf16.msra.mxu0 %v189
    %211 = vmatprep.subr.bf16.mxu0 0
    %212 = vmatpush1.bf16.msra.mxu0 %v190
    %213 = vmatprep.subr.bf16.mxu0 0
    %214 = vmatpush1.bf16.msra.mxu0 %v191
    %215 = vmatprep.subr.bf16.mxu0 0
    %216 = vmatpush1.bf16.msra.mxu0 %v192
    %217 = vmatprep.subr.bf16.mxu0 0
    %218 = vmatpush1.bf16.msra.mxu0 0
    %219 = vmatprep.subr.bf16.mxu0 0
    %220 = vmatpush1.bf16.msra.mxu0 0
    %221 = vmatprep.subr.bf16.mxu0 0
    %222 = vmatpush1.bf16.msra.mxu0 0
    %223 = vmatprep.subr.bf16.mxu0 0
    %224 = vmatpush1.bf16.msra.mxu0 0
    %225 = vmatprep.subr.bf16.mxu0 0
    %226 = vmatpush1.bf16.msra.mxu0 0
    %227 = vmatprep.subr.bf16.mxu0 0
    %228 = vmatpush1.bf16.msra.mxu0 0
    %229 = vmatprep.subr.bf16.mxu0 0
    %230 = vmatpush1.bf16.msra.mxu0 0
    %231 = vmatprep.subr.bf16.mxu0 0
    %232 = vmatpush1.bf16.msra.mxu0 0
    %233 = vmatprep.mubr.bf16.mxu0 0
    %234 = vmatmul.mubr.bf16.gmra.mrb[0].mxu0 %v128
    %v235 = vpop.f32.mrb[0].mxu0
    %v236 = vadd.f32 %v151, %v235
    %v237 = vpop.f32.mrb[0].mxu0
    %v238 = vpop.f32.mrb[0].mxu0
    %v239 = vadd.f32 %v151, %v238
    %v240 = vpop.f32.mrb[0].mxu0
    %241 = vdwg.mxu0
    %v242 = vtanh.pop %v236
    %v243 = vtanh.pop %v239
    %v244 = vpack.c.bf16 %v243, %v242
    %s245 = scalar_lea.vmem [#allocation6], 64
    %v246 = vld [vmem:[%s245] sm:$0xf]
    %v247 = vld [vmem:[%s245 + $0x4] sm:$0xf]
    %v248 = vld [vmem:[%s245 + $0x8] sm:$0xf]
    %v249 = vld [vmem:[%s245 + $0xc] sm:$0xf]
    %v250 = vld [vmem:[%s245 + $0x10] sm:$0xf]
    %v251 = vld [vmem:[%s245 + $0x14] sm:$0xf]
    %v252 = vld [vmem:[%s245 + $0x18] sm:$0xf]
    %v253 = vld [vmem:[%s245 + $0x1c] sm:$0xf]
    %v254 = vld [vmem:[%s245 + $0x20] sm:$0xf]
    %v255 = vld [vmem:[%s245 + $0x24] sm:$0xf]
    %v256 = vld [vmem:[%s245 + $0x28] sm:$0xf]
    %v257 = vld [vmem:[%s245 + $0x2c] sm:$0xf]
    %v258 = vld [vmem:[%s245 + $0x30] sm:$0xf]
    %v259 = vld [vmem:[%s245 + $0x34] sm:$0xf]
    %v260 = vld [vmem:[%s245 + $0x38] sm:$0xf]
    %v261 = vld [vmem:[%s245 + $0x3c] sm:$0xf]
    %s262 = scalar_lea.vmem %s3, 2
    %v263 = vld [vmem:[%s262] sm:$0x1]
    %v265 = vlaneseq
    %v266 = vshrl.u32 %v265, 7
    %v267 = vsub.s32 0, %v266
    %v268 = vrot.slane %v263, %v267
    %v286 = vunpack.c.l.b16 %v246
    %v287 = vunpack.c.l.b16 %v247
    %v288 = vunpack.c.l.b16 %v248
    %v289 = vunpack.c.l.b16 %v249
    %v290 = vunpack.c.l.b16 %v250
    %v291 = vunpack.c.l.b16 %v251
    %v292 = vunpack.c.l.b16 %v252
    %v293 = vunpack.c.l.b16 %v253
    %v294 = vunpack.c.l.b16 %v254
    %v295 = vunpack.c.l.b16 %v255
    %v296 = vunpack.c.l.b16 %v256
    %v297 = vunpack.c.l.b16 %v257
    %v298 = vunpack.c.l.b16 %v258
    %v299 = vunpack.c.l.b16 %v259
    %v300 = vunpack.c.l.b16 %v260
    %v301 = vunpack.c.l.b16 %v261
    %v302 = vpack.c.b16 %v287, %v286
    %v303 = vpack.c.b16 %v289, %v288
    %v304 = vpack.c.b16 %v291, %v290
    %v305 = vpack.c.b16 %v293, %v292
    %v306 = vpack.c.b16 %v295, %v294
    %v307 = vpack.c.b16 %v297, %v296
    %v308 = vpack.c.b16 %v299, %v298
    %v309 = vpack.c.b16 %v301, %v300
    %318 = vmatprep.subr.bf16.mxu0 0
    %319 = vmatpush1.bf16.msra.mxu0 %v302
    %320 = vmatprep.subr.bf16.mxu0 0
    %321 = vmatpush1.bf16.msra.mxu0 %v303
    %322 = vmatprep.subr.bf16.mxu0 0
    %323 = vmatpush1.bf16.msra.mxu0 %v304
    %324 = vmatprep.subr.bf16.mxu0 0
    %325 = vmatpush1.bf16.msra.mxu0 %v305
    %326 = vmatprep.subr.bf16.mxu0 0
    %327 = vmatpush1.bf16.msra.mxu0 %v306
    %328 = vmatprep.subr.bf16.mxu0 0
    %329 = vmatpush1.bf16.msra.mxu0 %v307
    %330 = vmatprep.subr.bf16.mxu0 0
    %331 = vmatpush1.bf16.msra.mxu0 %v308
    %332 = vmatprep.subr.bf16.mxu0 0
    %333 = vmatpush1.bf16.msra.mxu0 %v309
    %334 = vmatprep.subr.bf16.mxu0 0
    %335 = vmatpush1.bf16.msra.mxu0 0
    %336 = vmatprep.subr.bf16.mxu0 0
    %337 = vmatpush1.bf16.msra.mxu0 0
    %338 = vmatprep.subr.bf16.mxu0 0
    %339 = vmatpush1.bf16.msra.mxu0 0
    %340 = vmatprep.subr.bf16.mxu0 0
    %341 = vmatpush1.bf16.msra.mxu0 0
    %342 = vmatprep.subr.bf16.mxu0 0
    %343 = vmatpush1.bf16.msra.mxu0 0
    %344 = vmatprep.subr.bf16.mxu0 0
    %345 = vmatpush1.bf16.msra.mxu0 0
    %346 = vmatprep.subr.bf16.mxu0 0
    %347 = vmatpush1.bf16.msra.mxu0 0
    %348 = vmatprep.subr.bf16.mxu0 0
    %349 = vmatpush1.bf16.msra.mxu0 0
    %350 = vmatprep.mubr.bf16.mxu0 0
    %351 = vmatmul.mubr.bf16.gmra.mrb[0].mxu0 %v244
    %v352 = vpop.f32.mrb[0].mxu0
    %v353 = vadd.f32 %v268, %v352
    %v354 = vpop.f32.mrb[0].mxu0
    %v355 = vpop.f32.mrb[0].mxu0
    %v356 = vadd.f32 %v268, %v355
    %v357 = vpop.f32.mrb[0].mxu0
    %358 = vdwg.mxu0
    %vm359 = vcmask 64512
    %360 = vst.msk [vmem:[%s4] sm:$0xff] %vm359, %v353
    %361 = vst.msk [vmem:[%s4 + $0x8] sm:$0xff] %vm359, %v356
    // Predicated region
    $region30: #{tpu_custom_call.1} parent=1 // pred_check
      _
    $region31: #{tpu_custom_call.1} parent=1 // pred_check_branch
      %363 = sbr.rel (0) target = $region33
    $region32: #{tpu_custom_call.1} parent=1 // pred_region
      _
    $region33: #{tpu_custom_call.1} parent=1 // pred_fallthru
      _
    // Predicated region
    $region34: #{tpu_custom_call.1} parent=1 // pred_check
      _
    $region35: #{tpu_custom_call.1} parent=1 // pred_check_branch
      %365 = sbr.rel (0) target = $region37
    $region36: #{tpu_custom_call.1} parent=1 // pred_region
      _
    $region37: #{tpu_custom_call.1} parent=1 // pred_fallthru
      _
    %366 = vsyncpa [#allocation3], 1
    %367 = vsyncpa [#allocation5], 1

</llo_original>
